<compile_context>
chip_gen: v5e
topology: v5e:2x2
jax: 0.10.0
libtpu: 0.0.40
codegen_flags: <defaults>
</compile_context>

<pallas_src>
import functools

import jax
import jax.numpy as jnp
from jax import lax
from jax.experimental import pallas as pl
from jax.experimental.pallas import tpu as pltpu


def _round_up(x, m):
    return ((x + m - 1) // m) * m


def _spike_encoder_kernel(tok_ref, z0_tab_ref, w1_ref, b1_ref, out_ref,
                          *, seq, timesteps, batch_pad, threshold, leak,
                          inv_batch):
    """tok_ref: (S*Bp, 1) int32; z0_tab_ref: (Vp, Hp); w1_ref: (Hp, Hp);
       b1_ref: (1, Hp); out_ref: (Bp, Hp)."""
    sb = tok_ref.shape[0]
    vocab_p = z0_tab_ref.shape[0]
    hp = out_ref.shape[1]

    # Embedding gather + Linear-0, folded into ONE MXU launch:
    # one_hot(tokens) @ z0_table  ->  z0 for every (word, batch) row.
    lane_ids = lax.broadcasted_iota(jnp.int32, (sb, vocab_p), 1)
    one_hot = (lane_ids == tok_ref[...]).astype(jnp.float32)          # (S*Bp, Vp)
    z0_all = jnp.dot(one_hot, z0_tab_ref[...],
                     preferred_element_type=jnp.float32)              # (S*Bp, Hp)

    lif = jnp.zeros((batch_pad, hp), jnp.float32)        # LIF membrane (reset_LIF)
    spike_sum = jnp.zeros((batch_pad, hp), jnp.float32)  # sum of spikes over S*T steps

    # Word loop: static sublane-aligned slices of z0_all (Bp is a multiple of 8).
    for w in range(seq):
        z0 = z0_all[w * batch_pad:(w + 1) * batch_pad, :]             # (Bp, Hp)

        def step(_, carry, z0=z0):
            lif_c, ssum = carry
            mem = leak * lif_c + z0
            # spike = (mem / thr - 1 > 0)  ==  (mem > thr)   for thr > 0
            spike = (mem > threshold).astype(jnp.float32)
            return mem - threshold * spike, ssum + spike

        # T is small; full unroll gives the LLO scheduler full visibility.
        lif, spike_sum = lax.fori_loop(0, timesteps, step, (lif, spike_sum),
                                       unroll=True)

    # Single hoisted Linear-1 (Integrate accumulation is linear in the spikes),
    # b1 applied every (word, timestep) step -> add it seq*timesteps times once.
    integ = jnp.dot(spike_sum, w1_ref[...], preferred_element_type=jnp.float32)
    integ = integ + (seq * timesteps) * b1_ref[...]

    # Final "out / embed.shape[1]"; embed is [S, B, E] so shape[1] == real batch.
    out_ref[...] = integ * inv_batch


def prepare_spike_encoder_params(emb_table, w0, b0, w1, b1):
    """One-time, init-time parameter prep (NOT on the per-call path):
    folds embedding+Linear-0 into a z0 lookup table and pads lane-dense."""
    vocab, _ = emb_table.shape
    h = w0.shape[1]
    hp = _round_up(h, 128)
    vp = _round_up(vocab, 128)

    # z0_table[v] = emb_table[v] @ W0 + b0 ; padded rows/cols are zero so padded
    # lanes produce zero z0 -> zero spikes -> zero output lanes (thr > 0).
    z0_tab = (emb_table.astype(jnp.float32) @ w0.astype(jnp.float32)
              + b0.astype(jnp.float32))
    z0_tab = jnp.pad(z0_tab, ((0, vp - vocab), (0, hp - h)))
    w1_p = jnp.pad(w1.astype(jnp.float32), ((0, hp - h), (0, hp - h)))
    b1_p = jnp.pad(b1.astype(jnp.float32), (0, hp - h)).reshape(1, hp)
    return {"z0_table": z0_tab, "w1": w1_p, "b1": b1_p,
            "hidden": h, "hidden_pad": hp, "vocab_pad": vp}


def spike_encoder_forward(tokens, params, threshold, leak, *, timesteps):
    """tokens: int32 [S, B]; returns PADDED f32 [Bp, Hp] (real data in [:B, :H];
    padded lanes/rows are zeros / ignorable and sliced by the consumer)."""
    assert threshold > 0.0, "spike = (mem > thr) form requires a positive threshold"

    S, B = tokens.shape
    Bp = _round_up(B, 8)                       # keep word slices sublane-aligned
    Hp = params["hidden_pad"]
    Vp = params["vocab_pad"]

    if Bp != B:
        # Padded batch rows use token 0; rows are independent and ignored downstream.
        tokens = jnp.pad(tokens, ((0, 0), (0, Bp - B)))
    tok2d = tokens.reshape(S * Bp, 1).astype(jnp.int32)

    kernel = functools.partial(
        _spike_encoder_kernel,
        seq=S, timesteps=timesteps, batch_pad=Bp,
        threshold=float(threshold), leak=float(leak), inv_batch=1.0 / B)

    flops = 2 * S * Bp * Vp * Hp + 2 * Bp * Hp * Hp
    bytes_accessed = 4 * (tok2d.size + params["z0_table"].size
                          + params["w1"].size + params["b1"].size + Bp * Hp)

    out_p = pl.pallas_call(
        kernel,
        out_shape=jax.ShapeDtypeStruct((Bp, Hp), jnp.float32),
        # No grid: whole (tiny, ~130 KiB) problem lives in VMEM for one invocation.
        in_specs=[pl.BlockSpec(memory_space=pltpu.MemorySpace.VMEM)] * 4,
        out_specs=pl.BlockSpec(memory_space=pltpu.MemorySpace.VMEM),
        cost_estimate=pl.CostEstimate(flops=flops, transcendentals=0,
                                      bytes_accessed=bytes_accessed),
    )(tok2d, params["z0_table"], params["w1"], params["b1"])

    return out_p


def spike_encoder_ref(tokens, emb_table, w0, b0, w1, b1,
                      threshold, leak, *, timesteps):
    """Pure-JAX reference reproducing the PyTorch forward semantics."""
    embed = emb_table[tokens]                  # (S, B, E)
    S, B, _ = embed.shape
    H = w0.shape[1]
    lif = jnp.zeros((B, H), jnp.float32)
    integ = jnp.zeros((B, H), jnp.float32)
    for s in range(S):
        z0 = embed[s] @ w0 + b0
        for _ in range(timesteps):
            mem = leak * lif + z0
            mem_thr = mem / threshold - 1.0
            spike = (mem_thr > 0).astype(jnp.float32)
            lif = mem - threshold * spike
            integ = integ + spike @ w1 + b1
    return integ / B                           # embed.shape[1] == B for [S, B, E]


if __name__ == "__main__":
    # Small shapes consistent with the module.
    VOCAB = 20
    EMBED_DIM = 16
    HIDDEN = 32
    SEQ = 4
    BATCH = 8
    TIMESTEPS = 3
    THRESHOLD = 1.0
    LEAK = 0.95

    key = jax.random.PRNGKey(0)
    k_emb, k_w0, k_b0, k_w1, k_b1, k_tok = jax.random.split(key, 6)

    emb_table = jax.random.normal(k_emb, (VOCAB, EMBED_DIM), jnp.float32)
    # Weights stored transposed w.r.t. torch.nn.Linear ([out,in] -> [in,out]).
    w0 = jax.random.normal(k_w0, (EMBED_DIM, HIDDEN), jnp.float32) * 0.3
    b0 = jax.random.normal(k_b0, (HIDDEN,), jnp.float32) * 0.1
    w1 = jax.random.normal(k_w1, (HIDDEN, HIDDEN), jnp.float32) * 0.3
    b1 = jax.random.normal(k_b1, (HIDDEN,), jnp.float32) * 0.1

    tokens = jax.random.randint(k_tok, (SEQ, BATCH), 0, VOCAB, jnp.int32)

    # One-time parameter prep (init-time, not per call).
    params = prepare_spike_encoder_params(emb_table, w0, b0, w1, b1)

    out_p = spike_encoder_forward(tokens, params, THRESHOLD, LEAK,
                                  timesteps=TIMESTEPS)
    out_p = jax.block_until_ready(out_p)

    ref = spike_encoder_ref(tokens, emb_table, w0, b0, w1, b1,
                            THRESHOLD, LEAK, timesteps=TIMESTEPS)

    # Test-only slice of the padded output (a real consumer would keep it padded).
    out = out_p[:BATCH, :HIDDEN]
    assert out.shape == (BATCH, HIDDEN)
    assert jnp.allclose(out, ref, atol=1e-4, rtol=1e-4), "mismatch vs reference"
    # Padded hidden lanes must be exactly zero (zero pads + positive threshold).
    assert jnp.all(out_p[:, HIDDEN:] == 0.0), "padded lanes leaked"
    print("KERNEL_OK")
</pallas_src>

<mosaic_0001>
module attributes {stable_mosaic.version = 11 : i64} {
  func.func @_spike_encoder_kernel(%arg0: memref<32x1xi32, #tpu.memory_space<vmem>>, %arg1: memref<128x128xf32, #tpu.memory_space<vmem>>, %arg2: memref<128x128xf32, #tpu.memory_space<vmem>>, %arg3: memref<1x128xf32, #tpu.memory_space<vmem>>, %arg4: memref<8x128xf32, #tpu.memory_space<vmem>>) attributes {dimension_semantics = [], scalar_prefetch = 0 : i64, scratch_operands = 0 : i64, tpu.core_type = #tpu.core_type<tc>} {
    %0 = tpu.iota {dimensions = array<i32: 1>} : vector<32x128xi32>
    %c0 = arith.constant 0 : index
    %c0_0 = arith.constant 0 : index
    %1 = vector.load %arg0[%c0, %c0_0] : memref<32x1xi32, #tpu.memory_space<vmem>>, vector<32x1xi32>
    %2 = vector.broadcast %1 : vector<32x1xi32> to vector<32x128xi32>
    %3 = arith.cmpi eq, %0, %2 : vector<32x128xi32>
    %4 = arith.extui %3 : vector<32x128xi1> to vector<32x128xi32>
    %5 = arith.sitofp %4 : vector<32x128xi32> to vector<32x128xf32>
    %c0_1 = arith.constant 0 : index
    %c0_2 = arith.constant 0 : index
    %6 = vector.load %arg1[%c0_1, %c0_2] : memref<128x128xf32, #tpu.memory_space<vmem>>, vector<128x128xf32>
    %cst = arith.constant dense<0.000000e+00> : vector<32x128xf32>
    %7 = tpu.matmul %5, %6, %cst {dimension_numbers = #tpu.dot_dimension_numbers<[1], [0], [0], [1], [0, 0, 1, 1], [], []>} : vector<32x128xf32>, vector<128x128xf32>, vector<32x128xf32> -> vector<32x128xf32>
    %cst_3 = arith.constant 0.000000e+00 : f32
    %8 = vector.broadcast %cst_3 : f32 to vector<8x128xf32>
    %cst_4 = arith.constant 0.000000e+00 : f32
    %9 = vector.broadcast %cst_4 : f32 to vector<8x128xf32>
    %10 = vector.extract_strided_slice %7 {offsets = [0, 0], sizes = [8, 128], strides = [1, 1]} : vector<32x128xf32> to vector<8x128xf32>
    %c0_i32 = arith.constant 0 : i32
    %cst_5 = arith.constant 0.949999988 : f32
    %11 = vector.broadcast %cst_5 : f32 to vector<8x128xf32>
    %12 = arith.mulf %11, %8 : vector<8x128xf32>
    %13 = arith.addf %12, %10 : vector<8x128xf32>
    %cst_6 = arith.constant 1.000000e+00 : f32
    %14 = vector.broadcast %cst_6 : f32 to vector<8x128xf32>
    %15 = arith.cmpf ogt, %13, %14 : vector<8x128xf32>
    %16 = arith.extui %15 : vector<8x128xi1> to vector<8x128xi32>
    %17 = arith.sitofp %16 : vector<8x128xi32> to vector<8x128xf32>
    %cst_7 = arith.constant 1.000000e+00 : f32
    %18 = vector.broadcast %cst_7 : f32 to vector<8x128xf32>
    %19 = arith.mulf %18, %17 : vector<8x128xf32>
    %20 = arith.subf %13, %19 : vector<8x128xf32>
    %21 = arith.addf %9, %17 : vector<8x128xf32>
    %c1_i32 = arith.constant 1 : i32
    %cst_8 = arith.constant 0.949999988 : f32
    %22 = vector.broadcast %cst_8 : f32 to vector<8x128xf32>
    %23 = arith.mulf %22, %20 : vector<8x128xf32>
    %24 = arith.addf %23, %10 : vector<8x128xf32>
    %cst_9 = arith.constant 1.000000e+00 : f32
    %25 = vector.broadcast %cst_9 : f32 to vector<8x128xf32>
    %26 = arith.cmpf ogt, %24, %25 : vector<8x128xf32>
    %27 = arith.extui %26 : vector<8x128xi1> to vector<8x128xi32>
    %28 = arith.sitofp %27 : vector<8x128xi32> to vector<8x128xf32>
    %cst_10 = arith.constant 1.000000e+00 : f32
    %29 = vector.broadcast %cst_10 : f32 to vector<8x128xf32>
    %30 = arith.mulf %29, %28 : vector<8x128xf32>
    %31 = arith.subf %24, %30 : vector<8x128xf32>
    %32 = arith.addf %21, %28 : vector<8x128xf32>
    %c2_i32 = arith.constant 2 : i32
    %cst_11 = arith.constant 0.949999988 : f32
    %33 = vector.broadcast %cst_11 : f32 to vector<8x128xf32>
    %34 = arith.mulf %33, %31 : vector<8x128xf32>
    %35 = arith.addf %34, %10 : vector<8x128xf32>
    %cst_12 = arith.constant 1.000000e+00 : f32
    %36 = vector.broadcast %cst_12 : f32 to vector<8x128xf32>
    %37 = arith.cmpf ogt, %35, %36 : vector<8x128xf32>
    %38 = arith.extui %37 : vector<8x128xi1> to vector<8x128xi32>
    %39 = arith.sitofp %38 : vector<8x128xi32> to vector<8x128xf32>
    %cst_13 = arith.constant 1.000000e+00 : f32
    %40 = vector.broadcast %cst_13 : f32 to vector<8x128xf32>
    %41 = arith.mulf %40, %39 : vector<8x128xf32>
    %42 = arith.subf %35, %41 : vector<8x128xf32>
    %43 = arith.addf %32, %39 : vector<8x128xf32>
    %44 = vector.extract_strided_slice %7 {offsets = [8, 0], sizes = [8, 128], strides = [1, 1]} : vector<32x128xf32> to vector<8x128xf32>
    %c0_i32_14 = arith.constant 0 : i32
    %cst_15 = arith.constant 0.949999988 : f32
    %45 = vector.broadcast %cst_15 : f32 to vector<8x128xf32>
    %46 = arith.mulf %45, %42 : vector<8x128xf32>
    %47 = arith.addf %46, %44 : vector<8x128xf32>
    %cst_16 = arith.constant 1.000000e+00 : f32
    %48 = vector.broadcast %cst_16 : f32 to vector<8x128xf32>
    %49 = arith.cmpf ogt, %47, %48 : vector<8x128xf32>
    %50 = arith.extui %49 : vector<8x128xi1> to vector<8x128xi32>
    %51 = arith.sitofp %50 : vector<8x128xi32> to vector<8x128xf32>
    %cst_17 = arith.constant 1.000000e+00 : f32
    %52 = vector.broadcast %cst_17 : f32 to vector<8x128xf32>
    %53 = arith.mulf %52, %51 : vector<8x128xf32>
    %54 = arith.subf %47, %53 : vector<8x128xf32>
    %55 = arith.addf %43, %51 : vector<8x128xf32>
    %c1_i32_18 = arith.constant 1 : i32
    %cst_19 = arith.constant 0.949999988 : f32
    %56 = vector.broadcast %cst_19 : f32 to vector<8x128xf32>
    %57 = arith.mulf %56, %54 : vector<8x128xf32>
    %58 = arith.addf %57, %44 : vector<8x128xf32>
    %cst_20 = arith.constant 1.000000e+00 : f32
    %59 = vector.broadcast %cst_20 : f32 to vector<8x128xf32>
    %60 = arith.cmpf ogt, %58, %59 : vector<8x128xf32>
    %61 = arith.extui %60 : vector<8x128xi1> to vector<8x128xi32>
    %62 = arith.sitofp %61 : vector<8x128xi32> to vector<8x128xf32>
    %cst_21 = arith.constant 1.000000e+00 : f32
    %63 = vector.broadcast %cst_21 : f32 to vector<8x128xf32>
    %64 = arith.mulf %63, %62 : vector<8x128xf32>
    %65 = arith.subf %58, %64 : vector<8x128xf32>
    %66 = arith.addf %55, %62 : vector<8x128xf32>
    %c2_i32_22 = arith.constant 2 : i32
    %cst_23 = arith.constant 0.949999988 : f32
    %67 = vector.broadcast %cst_23 : f32 to vector<8x128xf32>
    %68 = arith.mulf %67, %65 : vector<8x128xf32>
    %69 = arith.addf %68, %44 : vector<8x128xf32>
    %cst_24 = arith.constant 1.000000e+00 : f32
    %70 = vector.broadcast %cst_24 : f32 to vector<8x128xf32>
    %71 = arith.cmpf ogt, %69, %70 : vector<8x128xf32>
    %72 = arith.extui %71 : vector<8x128xi1> to vector<8x128xi32>
    %73 = arith.sitofp %72 : vector<8x128xi32> to vector<8x128xf32>
    %cst_25 = arith.constant 1.000000e+00 : f32
    %74 = vector.broadcast %cst_25 : f32 to vector<8x128xf32>
    %75 = arith.mulf %74, %73 : vector<8x128xf32>
    %76 = arith.subf %69, %75 : vector<8x128xf32>
    %77 = arith.addf %66, %73 : vector<8x128xf32>
    %78 = vector.extract_strided_slice %7 {offsets = [16, 0], sizes = [8, 128], strides = [1, 1]} : vector<32x128xf32> to vector<8x128xf32>
    %c0_i32_26 = arith.constant 0 : i32
    %cst_27 = arith.constant 0.949999988 : f32
    %79 = vector.broadcast %cst_27 : f32 to vector<8x128xf32>
    %80 = arith.mulf %79, %76 : vector<8x128xf32>
    %81 = arith.addf %80, %78 : vector<8x128xf32>
    %cst_28 = arith.constant 1.000000e+00 : f32
    %82 = vector.broadcast %cst_28 : f32 to vector<8x128xf32>
    %83 = arith.cmpf ogt, %81, %82 : vector<8x128xf32>
    %84 = arith.extui %83 : vector<8x128xi1> to vector<8x128xi32>
    %85 = arith.sitofp %84 : vector<8x128xi32> to vector<8x128xf32>
    %cst_29 = arith.constant 1.000000e+00 : f32
    %86 = vector.broadcast %cst_29 : f32 to vector<8x128xf32>
    %87 = arith.mulf %86, %85 : vector<8x128xf32>
    %88 = arith.subf %81, %87 : vector<8x128xf32>
    %89 = arith.addf %77, %85 : vector<8x128xf32>
    %c1_i32_30 = arith.constant 1 : i32
    %cst_31 = arith.constant 0.949999988 : f32
    %90 = vector.broadcast %cst_31 : f32 to vector<8x128xf32>
    %91 = arith.mulf %90, %88 : vector<8x128xf32>
    %92 = arith.addf %91, %78 : vector<8x128xf32>
    %cst_32 = arith.constant 1.000000e+00 : f32
    %93 = vector.broadcast %cst_32 : f32 to vector<8x128xf32>
    %94 = arith.cmpf ogt, %92, %93 : vector<8x128xf32>
    %95 = arith.extui %94 : vector<8x128xi1> to vector<8x128xi32>
    %96 = arith.sitofp %95 : vector<8x128xi32> to vector<8x128xf32>
    %cst_33 = arith.constant 1.000000e+00 : f32
    %97 = vector.broadcast %cst_33 : f32 to vector<8x128xf32>
    %98 = arith.mulf %97, %96 : vector<8x128xf32>
    %99 = arith.subf %92, %98 : vector<8x128xf32>
    %100 = arith.addf %89, %96 : vector<8x128xf32>
    %c2_i32_34 = arith.constant 2 : i32
    %cst_35 = arith.constant 0.949999988 : f32
    %101 = vector.broadcast %cst_35 : f32 to vector<8x128xf32>
    %102 = arith.mulf %101, %99 : vector<8x128xf32>
    %103 = arith.addf %102, %78 : vector<8x128xf32>
    %cst_36 = arith.constant 1.000000e+00 : f32
    %104 = vector.broadcast %cst_36 : f32 to vector<8x128xf32>
    %105 = arith.cmpf ogt, %103, %104 : vector<8x128xf32>
    %106 = arith.extui %105 : vector<8x128xi1> to vector<8x128xi32>
    %107 = arith.sitofp %106 : vector<8x128xi32> to vector<8x128xf32>
    %cst_37 = arith.constant 1.000000e+00 : f32
    %108 = vector.broadcast %cst_37 : f32 to vector<8x128xf32>
    %109 = arith.mulf %108, %107 : vector<8x128xf32>
    %110 = arith.subf %103, %109 : vector<8x128xf32>
    %111 = arith.addf %100, %107 : vector<8x128xf32>
    %112 = vector.extract_strided_slice %7 {offsets = [24, 0], sizes = [8, 128], strides = [1, 1]} : vector<32x128xf32> to vector<8x128xf32>
    %c0_i32_38 = arith.constant 0 : i32
    %cst_39 = arith.constant 0.949999988 : f32
    %113 = vector.broadcast %cst_39 : f32 to vector<8x128xf32>
    %114 = arith.mulf %113, %110 : vector<8x128xf32>
    %115 = arith.addf %114, %112 : vector<8x128xf32>
    %cst_40 = arith.constant 1.000000e+00 : f32
    %116 = vector.broadcast %cst_40 : f32 to vector<8x128xf32>
    %117 = arith.cmpf ogt, %115, %116 : vector<8x128xf32>
    %118 = arith.extui %117 : vector<8x128xi1> to vector<8x128xi32>
    %119 = arith.sitofp %118 : vector<8x128xi32> to vector<8x128xf32>
    %cst_41 = arith.constant 1.000000e+00 : f32
    %120 = vector.broadcast %cst_41 : f32 to vector<8x128xf32>
    %121 = arith.mulf %120, %119 : vector<8x128xf32>
    %122 = arith.subf %115, %121 : vector<8x128xf32>
    %123 = arith.addf %111, %119 : vector<8x128xf32>
    %c1_i32_42 = arith.constant 1 : i32
    %cst_43 = arith.constant 0.949999988 : f32
    %124 = vector.broadcast %cst_43 : f32 to vector<8x128xf32>
    %125 = arith.mulf %124, %122 : vector<8x128xf32>
    %126 = arith.addf %125, %112 : vector<8x128xf32>
    %cst_44 = arith.constant 1.000000e+00 : f32
    %127 = vector.broadcast %cst_44 : f32 to vector<8x128xf32>
    %128 = arith.cmpf ogt, %126, %127 : vector<8x128xf32>
    %129 = arith.extui %128 : vector<8x128xi1> to vector<8x128xi32>
    %130 = arith.sitofp %129 : vector<8x128xi32> to vector<8x128xf32>
    %cst_45 = arith.constant 1.000000e+00 : f32
    %131 = vector.broadcast %cst_45 : f32 to vector<8x128xf32>
    %132 = arith.mulf %131, %130 : vector<8x128xf32>
    %133 = arith.subf %126, %132 : vector<8x128xf32>
    %134 = arith.addf %123, %130 : vector<8x128xf32>
    %c2_i32_46 = arith.constant 2 : i32
    %cst_47 = arith.constant 0.949999988 : f32
    %135 = vector.broadcast %cst_47 : f32 to vector<8x128xf32>
    %136 = arith.mulf %135, %133 : vector<8x128xf32>
    %137 = arith.addf %136, %112 : vector<8x128xf32>
    %cst_48 = arith.constant 1.000000e+00 : f32
    %138 = vector.broadcast %cst_48 : f32 to vector<8x128xf32>
    %139 = arith.cmpf ogt, %137, %138 : vector<8x128xf32>
    %140 = arith.extui %139 : vector<8x128xi1> to vector<8x128xi32>
    %141 = arith.sitofp %140 : vector<8x128xi32> to vector<8x128xf32>
    %cst_49 = arith.constant 1.000000e+00 : f32
    %142 = vector.broadcast %cst_49 : f32 to vector<8x128xf32>
    %143 = arith.mulf %142, %141 : vector<8x128xf32>
    %144 = arith.subf %137, %143 : vector<8x128xf32>
    %145 = arith.addf %134, %141 : vector<8x128xf32>
    %c0_50 = arith.constant 0 : index
    %c0_51 = arith.constant 0 : index
    %146 = vector.load %arg2[%c0_50, %c0_51] : memref<128x128xf32, #tpu.memory_space<vmem>>, vector<128x128xf32>
    %cst_52 = arith.constant dense<0.000000e+00> : vector<8x128xf32>
    %147 = tpu.matmul %145, %146, %cst_52 {dimension_numbers = #tpu.dot_dimension_numbers<[1], [0], [0], [1], [0, 0, 1, 1], [], []>} : vector<8x128xf32>, vector<128x128xf32>, vector<8x128xf32> -> vector<8x128xf32>
    %c0_53 = arith.constant 0 : index
    %c0_54 = arith.constant 0 : index
    %148 = vector.load %arg3[%c0_53, %c0_54] : memref<1x128xf32, #tpu.memory_space<vmem>>, vector<1x128xf32>
    %cst_55 = arith.constant 1.200000e+01 : f32
    %149 = vector.broadcast %cst_55 : f32 to vector<1x128xf32>
    %150 = arith.mulf %149, %148 : vector<1x128xf32>
    %151 = vector.broadcast %150 : vector<1x128xf32> to vector<8x128xf32>
    %152 = arith.addf %147, %151 : vector<8x128xf32>
    %cst_56 = arith.constant 1.250000e-01 : f32
    %153 = vector.broadcast %cst_56 : f32 to vector<8x128xf32>
    %154 = arith.mulf %152, %153 : vector<8x128xf32>
    %c0_57 = arith.constant 0 : index
    %c0_58 = arith.constant 0 : index
    %155 = vector.load %arg4[%c0_57, %c0_58] : memref<8x128xf32, #tpu.memory_space<vmem>>, vector<8x128xf32>
    tpu.vector_store %arg4[%c0_57, %c0_58], %154 {strides = array<i32>} : memref<8x128xf32, #tpu.memory_space<vmem>>, vector<8x128xf32>,
    return
  }
}

</mosaic_0001>

<llo_original>
// kernel: tpu_custom_call.1
$region0: #{tpu_custom_call.1}
  #allocation0 [shape = 'u32[]', space=smem, size = 0x4, offset = 0x4, fixed_abs, tag = 'smem constant byte address 0x4 - core index']
  #allocation1 [shape = 'u32[72,128]{1,0:T(1,128)}', space=vmem, size = 0x9000, scoped, tag = 'internal scratch']
  %s0 = inlined_call_operand.vmem [shape: s32[32,1], index: 0, kind: input, shape index: {}]
  %s1 = inlined_call_operand.hbm [shape: f32[128,128], index: 1, kind: input, shape index: {}]
  %s2 = inlined_call_operand.hbm [shape: f32[128,128], index: 2, kind: input, shape index: {}]
  %s3 = inlined_call_operand.vmem [shape: f32[1,128], index: 3, kind: input, shape index: {}]
  %s4 = inlined_call_operand.hbm [shape: f32[8,128], index: 4, kind: output, shape index: {}]
  %s5 = sld [smem:[#allocation0]]
  $region34: #{tpu_custom_call.1} parent=0
    _
  %s7 = ssub.s32 1, %s5
  %s8 = scalar_select 0, %s7, %s5
  $region1: #{tpu_custom_call.1} parent=0
    #allocation2 [shape = 'u8[65536]{0}', space=vmem, size = 0x10000, scoped, tag = 'input window, operand 1, single buffered']
    #allocation3 [shape = 's32[1]{0}', space=sflag, size = 0x4, scoped, tag = 'scoped memory for tpu_custom_call.1']
    #allocation4 [shape = 's32[1]{0}', space=sflag, size = 0x4, scoped, tag = 'scoped memory for tpu_custom_call.1']
    #allocation5 [shape = 'u8[65536]{0}', space=vmem, size = 0x10000, scoped, tag = 'input window, operand 2, single buffered']
    #allocation6 [shape = 's32[1]{0}', space=sflag, size = 0x4, scoped, tag = 'scoped memory for tpu_custom_call.1']
    #allocation7 [shape = 'u8[4096]{0}', space=vmem, size = 0x1000, scoped, tag = 'output window, operand 0, single buffered']
    %9 = vsyncpa [#allocation3], 0
    %10 = vsyncpa [#allocation6], 0
    %11 = vsyncpa [#allocation4], 0
    // Predicated region
    $region2: #{tpu_custom_call.1} parent=1 // pred_check
      _
    $region3: #{tpu_custom_call.1} parent=1 // pred_check_branch
      %13 = sbr.rel (0) target = $region5
    $region4: #{tpu_custom_call.1} parent=1 // pred_region
      _
    $region5: #{tpu_custom_call.1} parent=1 // pred_fallthru
      _
    // Predicated region
    $region6: #{tpu_custom_call.1} parent=1 // pred_check
      _
    $region7: #{tpu_custom_call.1} parent=1 // pred_check_branch
      %15 = sbr.rel (0) target = $region9
    $region8: #{tpu_custom_call.1} parent=1 // pred_region
      %17 = vsyncadd [#allocation3], 0
      %s18 = sshll.u32 %s1, 4
      %s19 = int_to_ptr.hbm [resolvable:$true] %s18
      %s20 = sshll.u32 [#allocation2], 4
      %s21 = int_to_ptr.vmem [resolvable:$true] %s20
      %26 = dma.hbm_to_vmem [thread:$0]  %s19, 2048, %s21, [#allocation3], 128, 128, 8
    $region9: #{tpu_custom_call.1} parent=1 // pred_fallthru
      _
    // Predicated region
    $region10: #{tpu_custom_call.1} parent=1 // pred_check
      _
    $region11: #{tpu_custom_call.1} parent=1 // pred_check_branch
      %28 = sbr.rel (0) target = $region13
    $region12: #{tpu_custom_call.1} parent=1 // pred_region
      %30 = vsyncadd [#allocation6], 0
      %s31 = sshll.u32 %s2, 4
      %s32 = int_to_ptr.hbm [resolvable:$true] %s31
      %s33 = sshll.u32 [#allocation5], 4
      %s34 = int_to_ptr.vmem [resolvable:$true] %s33
      %39 = dma.hbm_to_vmem [thread:$0]  %s32, 2048, %s34, [#allocation6], 128, 128, 8
    $region13: #{tpu_custom_call.1} parent=1 // pred_fallthru
      _
    // Predicated region
    $region14: #{tpu_custom_call.1} parent=1 // pred_check
      _
    $region15: #{tpu_custom_call.1} parent=1 // pred_check_branch
      %41 = sbr.rel (0) target = $region17
    $region16: #{tpu_custom_call.1} parent=1 // pred_region
      _
    $region17: #{tpu_custom_call.1} parent=1 // pred_fallthru
      _
    // Predicated region
    $region18: #{tpu_custom_call.1} parent=1 // pred_check
      _
    $region19: #{tpu_custom_call.1} parent=1 // pred_check_branch
      %43 = sbr.rel (0) target = $region21
    $region20: #{tpu_custom_call.1} parent=1 // pred_region
      %45 = dma.done [#allocation3], 2048
    $region21: #{tpu_custom_call.1} parent=1 // pred_fallthru
      _
    // Predicated region
    $region22: #{tpu_custom_call.1} parent=1 // pred_check
      _
    $region23: #{tpu_custom_call.1} parent=1 // pred_check_branch
      %47 = sbr.rel (0) target = $region25
    $region24: #{tpu_custom_call.1} parent=1 // pred_region
      %49 = dma.done [#allocation6], 2048
    $region25: #{tpu_custom_call.1} parent=1 // pred_fallthru
      _
    %v50 = vlaneseq
    %v51 = vand.u32 %v50, 127
    %v52 = vld [vmem:[%s0] sm:$0xff]
    %v53 = vld [vmem:[%s0 + $0x8] sm:$0xff]
    %v54 = vld [vmem:[%s0 + $0x10] sm:$0xff]
    %v55 = vld [vmem:[%s0 + $0x18] sm:$0xff]
    %56 = vset.pattern.permute.xlu0 0
    %57 = vperm.xlu0 %56, %v52
    %v58 = vpop.permute.xlu0 %57
    %59 = vset.pattern.permute.xlu0 0
    %60 = vperm.xlu0 %59, %v53
    %v61 = vpop.permute.xlu0 %60
    %62 = vset.pattern.permute.xlu0 0
    %63 = vperm.xlu0 %62, %v54
    %v64 = vpop.permute.xlu0 %63
    %65 = vset.pattern.permute.xlu0 0
    %66 = vperm.xlu0 %65, %v55
    %v67 = vpop.permute.xlu0 %66
    %vm68 = vcmp.eq.s32.totalorder %v51, %v58
    %vm69 = vcmp.eq.s32.totalorder %v51, %v61
    %vm70 = vcmp.eq.s32.totalorder %v51, %v64
    %vm71 = vcmp.eq.s32.totalorder %v51, %v67
    %v72 = vsel %vm68, 1, 0
    %v73 = vsel %vm69, 1, 0
    %v74 = vsel %vm70, 1, 0
    %v75 = vsel %vm71, 1, 0
    %v76 = vcvt.s32.f32 %v72
    %v77 = vcvt.s32.f32 %v73
    %v78 = vcvt.s32.f32 %v74
    %v79 = vcvt.s32.f32 %v75
    %v80 = vld [vmem:[#allocation2] sm:$0xff]
    %v81 = vld [vmem:[#allocation2 + $0x8] sm:$0xff]
    %v82 = vld [vmem:[#allocation2 + $0x10] sm:$0xff]
    %v83 = vld [vmem:[#allocation2 + $0x18] sm:$0xff]
    %v84 = vld [vmem:[#allocation2 + $0x20] sm:$0xff]
    %v85 = vld [vmem:[#allocation2 + $0x28] sm:$0xff]
    %v86 = vld [vmem:[#allocation2 + $0x30] sm:$0xff]
    %v87 = vld [vmem:[#allocation2 + $0x38] sm:$0xff]
    %v88 = vld [vmem:[#allocation2 + $0x40] sm:$0xff]
    %v89 = vld [vmem:[#allocation2 + $0x48] sm:$0xff]
    %v90 = vld [vmem:[#allocation2 + $0x50] sm:$0xff]
    %v91 = vld [vmem:[#allocation2 + $0x58] sm:$0xff]
    %v92 = vld [vmem:[#allocation2 + $0x60] sm:$0xff]
    %v93 = vld [vmem:[#allocation2 + $0x68] sm:$0xff]
    %v94 = vld [vmem:[#allocation2 + $0x70] sm:$0xff]
    %v95 = vld [vmem:[#allocation2 + $0x78] sm:$0xff]
    %96 = vmatpush.msra.mxu0 %v95
    %97 = vmatpush.msra.mxu0 %v94
    %98 = vmatpush.msra.mxu0 %v93
    %99 = vmatpush.msra.mxu0 %v92
    %100 = vmatpush.msra.mxu0 %v91
    %101 = vmatpush.msra.mxu0 %v90
    %102 = vmatpush.msra.mxu0 %v89
    %103 = vmatpush.msra.mxu0 %v88
    %104 = vmatpush.msra.mxu0 %v87
    %105 = vmatpush.msra.mxu0 %v86
    %106 = vmatpush.msra.mxu0 %v85
    %107 = vmatpush.msra.mxu0 %v84
    %108 = vmatpush.msra.mxu0 %v83
    %109 = vmatpush.msra.mxu0 %v82
    %110 = vmatpush.msra.mxu0 %v81
    %111 = vmatpush.msra.mxu0 %v80
    %112 = vmatmul.f32.gmra.mxu0 %v76
    %v113 = vpop.f32.mrf.mxu0
    %v114 = vadd.f32 0.0, %v113
    %115 = vmatmul.f32.gmra.mxu0 %v77
    %v116 = vpop.f32.mrf.mxu0
    %v117 = vadd.f32 0.0, %v116
    %118 = vmatmul.f32.gmra.mxu0 %v78
    %v119 = vpop.f32.mrf.mxu0
    %v120 = vadd.f32 0.0, %v119
    %121 = vmatmul.f32.gmra.mxu0 %v79
    %v122 = vpop.f32.mrf.mxu0
    %v123 = vadd.f32 0.0, %v122
    %124 = vdwg.mxu0
    %v125 = vadd.f32 %v114, 0.0
    %vm126 = vcmp.gt.f32.partialorder %v125, 1.0
    %v127 = vsel %vm126, 1, 0
    %v128 = vcvt.s32.f32 %v127
    %v129 = vsub.f32 %v125, %v128
    %v130 = vadd.f32 %v128, 0.0
    %v131 = vmul.f32 %v129, 0.95
    %v132 = vadd.f32 %v131, %v114
    %vm133 = vcmp.gt.f32.partialorder %v132, 1.0
    %v134 = vsel %vm133, 1, 0
    %v135 = vcvt.s32.f32 %v134
    %v136 = vsub.f32 %v132, %v135
    %v137 = vadd.f32 %v130, %v135
    %v138 = vmul.f32 %v136, 0.95
    %v139 = vadd.f32 %v138, %v114
    %vm140 = vcmp.gt.f32.partialorder %v139, 1.0
    %v141 = vsel %vm140, 1, 0
    %v142 = vcvt.s32.f32 %v141
    %v143 = vsub.f32 %v139, %v142
    %v144 = vadd.f32 %v137, %v142
    %v145 = vmul.f32 %v143, 0.95
    %v146 = vadd.f32 %v145, %v117
    %vm147 = vcmp.gt.f32.partialorder %v146, 1.0
    %v148 = vsel %vm147, 1, 0
    %v149 = vcvt.s32.f32 %v148
    %v150 = vsub.f32 %v146, %v149
    %v151 = vadd.f32 %v144, %v149
    %v152 = vmul.f32 %v150, 0.95
    %v153 = vadd.f32 %v152, %v117
    %vm154 = vcmp.gt.f32.partialorder %v153, 1.0
    %v155 = vsel %vm154, 1, 0
    %v156 = vcvt.s32.f32 %v155
    %v157 = vsub.f32 %v153, %v156
    %v158 = vadd.f32 %v151, %v156
    %v159 = vmul.f32 %v157, 0.95
    %v160 = vadd.f32 %v159, %v117
    %vm161 = vcmp.gt.f32.partialorder %v160, 1.0
    %v162 = vsel %vm161, 1, 0
    %v163 = vcvt.s32.f32 %v162
    %v164 = vsub.f32 %v160, %v163
    %v165 = vadd.f32 %v158, %v163
    %v166 = vmul.f32 %v164, 0.95
    %v167 = vadd.f32 %v166, %v120
    %vm168 = vcmp.gt.f32.partialorder %v167, 1.0
    %v169 = vsel %vm168, 1, 0
    %v170 = vcvt.s32.f32 %v169
    %v171 = vsub.f32 %v167, %v170
    %v172 = vadd.f32 %v165, %v170
    %v173 = vmul.f32 %v171, 0.95
    %v174 = vadd.f32 %v173, %v120
    %vm175 = vcmp.gt.f32.partialorder %v174, 1.0
    %v176 = vsel %vm175, 1, 0
    %v177 = vcvt.s32.f32 %v176
    %v178 = vsub.f32 %v174, %v177
    %v179 = vadd.f32 %v172, %v177
    %v180 = vmul.f32 %v178, 0.95
    %v181 = vadd.f32 %v180, %v120
    %vm182 = vcmp.gt.f32.partialorder %v181, 1.0
    %v183 = vsel %vm182, 1, 0
    %v184 = vcvt.s32.f32 %v183
    %v185 = vsub.f32 %v181, %v184
    %v186 = vadd.f32 %v179, %v184
    %v187 = vmul.f32 %v185, 0.95
    %v188 = vadd.f32 %v187, %v123
    %vm189 = vcmp.gt.f32.partialorder %v188, 1.0
    %v190 = vsel %vm189, 1, 0
    %v191 = vcvt.s32.f32 %v190
    %v192 = vsub.f32 %v188, %v191
    %v193 = vadd.f32 %v186, %v191
    %v194 = vmul.f32 %v192, 0.95
    %v195 = vadd.f32 %v194, %v123
    %vm196 = vcmp.gt.f32.partialorder %v195, 1.0
    %v197 = vsel %vm196, 1, 0
    %v198 = vcvt.s32.f32 %v197
    %v199 = vsub.f32 %v195, %v198
    %v200 = vadd.f32 %v193, %v198
    %v201 = vmul.f32 %v199, 0.95
    %v202 = vadd.f32 %v201, %v123
    %vm203 = vcmp.gt.f32.partialorder %v202, 1.0
    %v204 = vsel %vm203, 1, 0
    %v205 = vcvt.s32.f32 %v204
    %v206 = vadd.f32 %v200, %v205
    %v207 = vld [vmem:[#allocation5] sm:$0xff]
    %v208 = vld [vmem:[#allocation5 + $0x8] sm:$0xff]
    %v209 = vld [vmem:[#allocation5 + $0x10] sm:$0xff]
    %v210 = vld [vmem:[#allocation5 + $0x18] sm:$0xff]
    %v211 = vld [vmem:[#allocation5 + $0x20] sm:$0xff]
    %v212 = vld [vmem:[#allocation5 + $0x28] sm:$0xff]
    %v213 = vld [vmem:[#allocation5 + $0x30] sm:$0xff]
    %v214 = vld [vmem:[#allocation5 + $0x38] sm:$0xff]
    %v215 = vld [vmem:[#allocation5 + $0x40] sm:$0xff]
    %v216 = vld [vmem:[#allocation5 + $0x48] sm:$0xff]
    %v217 = vld [vmem:[#allocation5 + $0x50] sm:$0xff]
    %v218 = vld [vmem:[#allocation5 + $0x58] sm:$0xff]
    %v219 = vld [vmem:[#allocation5 + $0x60] sm:$0xff]
    %v220 = vld [vmem:[#allocation5 + $0x68] sm:$0xff]
    %v221 = vld [vmem:[#allocation5 + $0x70] sm:$0xff]
    %v222 = vld [vmem:[#allocation5 + $0x78] sm:$0xff]
    %v223 = vld [vmem:[%s3] sm:$0x1]
    %v224 = vmul.f32 %v223, 12.0
    %v226 = vperm.slane %v224, 0
    %228 = vmatpush.msra.mxu0 %v222
    %229 = vmatpush.msra.mxu0 %v221
    %230 = vmatpush.msra.mxu0 %v220
    %231 = vmatpush.msra.mxu0 %v219
    %232 = vmatpush.msra.mxu0 %v218
    %233 = vmatpush.msra.mxu0 %v217
    %234 = vmatpush.msra.mxu0 %v216
    %235 = vmatpush.msra.mxu0 %v215
    %236 = vmatpush.msra.mxu0 %v214
    %237 = vmatpush.msra.mxu0 %v213
    %238 = vmatpush.msra.mxu0 %v212
    %239 = vmatpush.msra.mxu0 %v211
    %240 = vmatpush.msra.mxu0 %v210
    %241 = vmatpush.msra.mxu0 %v209
    %242 = vmatpush.msra.mxu0 %v208
    %243 = vmatpush.msra.mxu0 %v207
    %244 = vmatmul.f32.gmra.mxu0 %v206
    %v245 = vpop.f32.mrf.mxu0
    %v246 = vadd.f32 %v226, %v245
    %247 = vdwg.mxu0
    %v248 = vmul.f32 %v246, 0.125
    %249 = vst [vmem:[#allocation7] sm:$0xff] %v248
    // Predicated region
    $region26: #{tpu_custom_call.1} parent=1 // pred_check
      _
    $region27: #{tpu_custom_call.1} parent=1 // pred_check_branch
      %251 = sbr.rel (0) target = $region29
    $region28: #{tpu_custom_call.1} parent=1 // pred_region
      %253 = vsyncadd [#allocation4], 0
      %s255 = sshll.u32 [#allocation7], 4
      %s256 = int_to_ptr.vmem [resolvable:$true] %s255
      %s257 = sshll.u32 %s4, 4
      %s258 = int_to_ptr.hbm [resolvable:$true] %s257
      %260 = dma.vmem_to_hbm [thread:$0]  %s256, 128, %s258, [#allocation4]
    $region29: #{tpu_custom_call.1} parent=1 // pred_fallthru
      _
    // Predicated region
    $region30: #{tpu_custom_call.1} parent=1 // pred_check
      _
    $region31: #{tpu_custom_call.1} parent=1 // pred_check_branch
      %262 = sbr.rel (0) target = $region33
    $region32: #{tpu_custom_call.1} parent=1 // pred_region
      %264 = dma.done [#allocation4], 128
    $region33: #{tpu_custom_call.1} parent=1 // pred_fallthru
      _
    %265 = vsyncpa [#allocation3], 1
    %266 = vsyncpa [#allocation6], 1
    %267 = vsyncpa [#allocation4], 1

</llo_original>
